<compile_context>
chip_gen: v7x
topology: tpu7x:2x2x1
jax: 0.10.0
libtpu: 0.0.40
codegen_flags: <defaults>
</compile_context>

<pallas_src>
import numpy as np
import jax
import jax.numpy as jnp
from jax.experimental import pallas as pl
from jax.experimental.pallas import tpu as pltpu

_EPS = 1e-12  # torch.nn.functional.normalize default eps


def _cdiv(a, b):
    return (a + b - 1) // b


def _round_up(x, m):
    return _cdiv(x, m) * m


def _vmem_budget_bytes():
    """(tile budget, vmem_limit_bytes) sized per TPU generation."""
    try:
        cap = int(pltpu.get_tpu_info().vmem_capacity_bytes)
    except Exception:
        cap = 64 << 20  # assume the smallest per-core VMEM (v7x) if the query fails
    if cap >= (96 << 20):          # v5e / v6e: 128 MiB physical VMEM
        budget = 56 << 20
    else:                          # v7x: 64 MiB per TensorCore
        budget = 26 << 20
    vmem_limit = int(max(min(budget + (8 << 20), cap - (16 << 20)), 32 << 20))
    return budget, vmem_limit


def _choose_block_rows(batch, k, budget_bytes):
    """Batch-tile rows (multiple of 128): as large as the VMEM budget allows,
    capped so the grid still has >= ~8 blocks whenever the batch permits."""
    per_row = 3 * 2 * k * 4 + 2 * 4   # h/r/t f32 tiles x 2 pipeline buffers + out col
    tb = budget_bytes // max(per_row, 1)
    tb = min(tb, 8192)                              # DMA efficiency plateaus well below this
    tb = min(tb, _round_up(_cdiv(batch, 8), 128))   # keep >= ~8 grid blocks (v7x megacore)
    return max(128, (tb // 128) * 128)


# ---------------------------------------------------------------------------
# Kernel math (shared by both kernels)
# ---------------------------------------------------------------------------

def _l2_normalize(x):
    # x * rsqrt(max(||x||^2, eps^2)) == x / max(||x||, eps)   (torch semantics)
    ss = jnp.sum(x * x, axis=-1, keepdims=True)          # exact f32 XLU reduce
    return x * jax.lax.rsqrt(jnp.maximum(ss, _EPS * _EPS))


def _translate_distance(h, r, t):
    d = (_l2_normalize(h) + _l2_normalize(r)) - _l2_normalize(t)
    # torch.norm(p=2, dim=1): sqrt of the sum of squares, no eps clamp
    return jnp.sqrt(jnp.sum(d * d, axis=-1, keepdims=True))


def _transe_kernel(h_ref, r_ref, t_ref, o_ref):
    """Unfused path: h/r/t are pre-gathered (TB, K) f32 tiles; o is (TB, 1)."""
    o_ref[...] = _translate_distance(h_ref[...], r_ref[...], t_ref[...])


def _transe_fused_kernel(hi_ref, ri_ref, ti_ref, ent_ref, rel_ref, o_ref):
    """Fused path: gather rows from the VMEM-resident tables inside the kernel.

    hi/ri/ti: (TB,) int32 index blocks; ent/rel: full (N, K) f32 tables kept
    resident in VMEM across all grid steps (constant index_map); o: (TB, 1).
    """
    ent = ent_ref[...]
    rel = rel_ref[...]
    h = jnp.take(ent, hi_ref[...], axis=0)
    r = jnp.take(rel, ri_ref[...], axis=0)
    t = jnp.take(ent, ti_ref[...], axis=0)
    o_ref[...] = _translate_distance(h, r, t)


# ---------------------------------------------------------------------------
# pallas_call wrappers
# ---------------------------------------------------------------------------

def transe_distance(h_e, r_e, t_e):
    """Pre-gathered embeddings (B, K) -> (B,) translation distances."""
    B, K = h_e.shape
    budget, vmem_limit = _vmem_budget_bytes()
    tb = _choose_block_rows(B, K, budget)
    b_pad = _round_up(B, tb)

    def prep(x):
        x = x.astype(jnp.float32)
        return x if b_pad == B else jnp.pad(x, ((0, b_pad - B), (0, 0)))

    # Block last dim == full K: no lane padding, no extra HBM pad copy.
    in_spec = pl.BlockSpec((tb, K), lambda i: (i, 0))
    out_spec = pl.BlockSpec((tb, 1), lambda i: (i, 0))

    out = pl.pallas_call(
        _transe_kernel,
        out_shape=jax.ShapeDtypeStruct((b_pad, 1), jnp.float32),
        grid_spec=pltpu.PrefetchScalarGridSpec(
            num_scalar_prefetch=0,
            grid=(b_pad // tb,),
            in_specs=[in_spec, in_spec, in_spec],
            out_specs=out_spec,
        ),
        compiler_params=pltpu.CompilerParams(
            dimension_semantics=("parallel",),
            vmem_limit_bytes=vmem_limit,
        ),
    )(prep(h_e), prep(r_e), prep(t_e))
    return out[:B, 0]


def transe_distance_fused(entity_table, relation_table, head, relation, tail):
    """Fused gather + distance: (B,) int32 indices + (N,K)/(M,K) tables -> (B,)."""
    B = head.shape[0]
    _, K = entity_table.shape
    budget, vmem_limit = _vmem_budget_bytes()
    tb = _choose_block_rows(B, K, budget)
    b_pad = _round_up(B, tb)

    ent = entity_table.astype(jnp.float32)
    rel = relation_table.astype(jnp.float32)

    # Tables stay VMEM-resident; gathered (TB, K) temporaries live in vregs/VMEM.
    # Bail out (caller falls back to the unfused path) if that does not fit.
    need = 3 * (ent.size + rel.size) * 4 + 4 * tb * K * 4 + (6 << 20)
    if need > budget:
        raise ValueError("embedding tables too large for the VMEM-resident fused path")

    def prep_idx(i):
        i = i.astype(jnp.int32)
        return i if b_pad == B else jnp.pad(i, (0, b_pad - B))

    idx_spec = pl.BlockSpec((tb,), lambda i: (i,))
    ent_spec = pl.BlockSpec(ent.shape, lambda i: (0, 0))  # same block every step -> resident
    rel_spec = pl.BlockSpec(rel.shape, lambda i: (0, 0))
    out_spec = pl.BlockSpec((tb, 1), lambda i: (i, 0))

    out = pl.pallas_call(
        _transe_fused_kernel,
        out_shape=jax.ShapeDtypeStruct((b_pad, 1), jnp.float32),
        grid_spec=pltpu.PrefetchScalarGridSpec(
            num_scalar_prefetch=0,
            grid=(b_pad // tb,),
            in_specs=[idx_spec, idx_spec, idx_spec, ent_spec, rel_spec],
            out_specs=out_spec,
        ),
        compiler_params=pltpu.CompilerParams(
            dimension_semantics=("parallel",),
            vmem_limit_bytes=vmem_limit,
        ),
    )(prep_idx(head), prep_idx(relation), prep_idx(tail), ent, rel)
    return out[:B, 0]


# ---------------------------------------------------------------------------
# Module wrapper + reference
# ---------------------------------------------------------------------------

def _dense_reference(entity_embeddings, relation_embeddings, head, relation, tail):
    def norm(x):
        n = jnp.sqrt(jnp.sum(x * x, axis=1, keepdims=True))
        return x / jnp.maximum(n, _EPS)

    h = norm(jnp.take(entity_embeddings, head, axis=0))
    r = norm(jnp.take(relation_embeddings, relation, axis=0))
    t = norm(jnp.take(entity_embeddings, tail, axis=0))
    return jnp.sqrt(jnp.sum(((h + r) - t) ** 2, axis=1))


def _reference(model, head, relation, tail):
    return _dense_reference(model.entity_embeddings, model.relation_embeddings,
                            head, relation, tail)


class TransEJax:
    """Deterministic JAX re-implementation of the TransE module's forward."""

    def __init__(self, n_entities, n_relations, margin, k, key):
        self.n_entities = n_entities
        self.n_relations = n_relations
        self.margin = jnp.float32(margin)   # unused by forward (parity with torch)
        self.k = k
        bound = 6.0 / np.sqrt(k)
        k_e, k_r = jax.random.split(key)
        self.entity_embeddings = jax.random.uniform(
            k_e, (n_entities, k), minval=-bound, maxval=bound, dtype=jnp.float32
        )
        self.relation_embeddings = jax.random.uniform(
            k_r, (n_relations, k), minval=-bound, maxval=bound, dtype=jnp.float32
        )
        self._use_fused = None  # None = untested, True/False after first call

    def forward(self, head, relation, tail):
        head = jnp.asarray(head, dtype=jnp.int32)
        relation = jnp.asarray(relation, dtype=jnp.int32)
        tail = jnp.asarray(tail, dtype=jnp.int32)

        if self._use_fused is not False:
            try:
                out = transe_distance_fused(
                    self.entity_embeddings, self.relation_embeddings,
                    head, relation, tail)
                if self._use_fused is None:
                    # One-time probe: in-kernel dynamic gather support varies
                    # across jax/Mosaic versions; validate before committing.
                    out = jax.block_until_ready(out)
                    ref = _dense_reference(self.entity_embeddings,
                                           self.relation_embeddings,
                                           head, relation, tail)
                    if not bool(jnp.allclose(out, ref, rtol=1e-5, atol=1e-5)):
                        raise RuntimeError("fused gather self-check failed")
                    self._use_fused = True
                return out
            except Exception:
                self._use_fused = False  # fall back to the unfused path below

        # Unfused fallback: XLA gather in HBM, distance math in the Pallas kernel.
        h_e = jnp.take(self.entity_embeddings, head, axis=0)
        r_e = jnp.take(self.relation_embeddings, relation, axis=0)
        t_e = jnp.take(self.entity_embeddings, tail, axis=0)
        return transe_distance(h_e, r_e, t_e)


if __name__ == "__main__":
    key = jax.random.PRNGKey(0)
    k_init, k_h, k_r, k_t = jax.random.split(key, 4)

    n_entities, n_relations, k, margin = 32, 8, 32, 1.0
    batch = 8

    model = TransEJax(n_entities, n_relations, margin, k, k_init)

    head = jax.random.randint(k_h, (batch,), 0, n_entities, dtype=jnp.int32)
    relation = jax.random.randint(k_r, (batch,), 0, n_relations, dtype=jnp.int32)
    tail = jax.random.randint(k_t, (batch,), 0, n_entities, dtype=jnp.int32)

    loss = model.forward(head, relation, tail)
    loss = jax.block_until_ready(loss)

    ref = _reference(model, head, relation, tail)
    np.testing.assert_allclose(np.asarray(loss), np.asarray(ref), rtol=1e-5, atol=1e-5)

    print("KERNEL_OK")
</pallas_src>

<mosaic_0001>
module attributes {stable_mosaic.version = 11 : i64} {
  func.func @_transe_kernel(%arg0: i32, %arg1: memref<128x32xf32, #tpu.memory_space<vmem>>, %arg2: memref<128x32xf32, #tpu.memory_space<vmem>>, %arg3: memref<128x32xf32, #tpu.memory_space<vmem>>, %arg4: memref<128x1xf32, #tpu.memory_space<vmem>>) attributes {dimension_semantics = [#tpu.dimension_semantics<parallel>], iteration_bounds = array<i64: 1>, scalar_prefetch = 0 : i64, scratch_operands = 0 : i64, tpu.core_type = #tpu.core_type<tc>, window_params = [{transform_indices = @transform_0, window_bounds = array<i64: 128, 32>}, {transform_indices = @transform_1, window_bounds = array<i64: 128, 32>}, {transform_indices = @transform_2, window_bounds = array<i64: 128, 32>}, {transform_indices = @transform_3, window_bounds = array<i64: 128, 1>}]} {
    %c0 = arith.constant 0 : index
    %c0_0 = arith.constant 0 : index
    %0 = vector.load %arg1[%c0, %c0_0] : memref<128x32xf32, #tpu.memory_space<vmem>>, vector<128x32xf32>
    %c0_1 = arith.constant 0 : index
    %c0_2 = arith.constant 0 : index
    %1 = vector.load %arg2[%c0_1, %c0_2] : memref<128x32xf32, #tpu.memory_space<vmem>>, vector<128x32xf32>
    %c0_3 = arith.constant 0 : index
    %c0_4 = arith.constant 0 : index
    %2 = vector.load %arg3[%c0_3, %c0_4] : memref<128x32xf32, #tpu.memory_space<vmem>>, vector<128x32xf32>
    %3 = arith.mulf %0, %0 : vector<128x32xf32>
    %cst = arith.constant dense<0.000000e+00> : vector<128xf32>
    %4 = vector.multi_reduction <add>, %3, %cst [1] : vector<128x32xf32> to vector<128xf32>
    %5 = vector.shape_cast %4 : vector<128xf32> to vector<128x1xf32>
    %cst_5 = arith.constant 1.000000e-24 : f32
    %6 = vector.broadcast %cst_5 : f32 to vector<128x1xf32>
    %7 = arith.maximumf %5, %6 : vector<128x1xf32>
    %8 = math.rsqrt %7 : vector<128x1xf32>
    %9 = vector.broadcast %8 : vector<128x1xf32> to vector<128x32xf32>
    %10 = arith.mulf %0, %9 : vector<128x32xf32>
    %11 = arith.mulf %1, %1 : vector<128x32xf32>
    %cst_6 = arith.constant dense<0.000000e+00> : vector<128xf32>
    %12 = vector.multi_reduction <add>, %11, %cst_6 [1] : vector<128x32xf32> to vector<128xf32>
    %13 = vector.shape_cast %12 : vector<128xf32> to vector<128x1xf32>
    %cst_7 = arith.constant 1.000000e-24 : f32
    %14 = vector.broadcast %cst_7 : f32 to vector<128x1xf32>
    %15 = arith.maximumf %13, %14 : vector<128x1xf32>
    %16 = math.rsqrt %15 : vector<128x1xf32>
    %17 = vector.broadcast %16 : vector<128x1xf32> to vector<128x32xf32>
    %18 = arith.mulf %1, %17 : vector<128x32xf32>
    %19 = arith.addf %10, %18 : vector<128x32xf32>
    %20 = arith.mulf %2, %2 : vector<128x32xf32>
    %cst_8 = arith.constant dense<0.000000e+00> : vector<128xf32>
    %21 = vector.multi_reduction <add>, %20, %cst_8 [1] : vector<128x32xf32> to vector<128xf32>
    %22 = vector.shape_cast %21 : vector<128xf32> to vector<128x1xf32>
    %cst_9 = arith.constant 1.000000e-24 : f32
    %23 = vector.broadcast %cst_9 : f32 to vector<128x1xf32>
    %24 = arith.maximumf %22, %23 : vector<128x1xf32>
    %25 = math.rsqrt %24 : vector<128x1xf32>
    %26 = vector.broadcast %25 : vector<128x1xf32> to vector<128x32xf32>
    %27 = arith.mulf %2, %26 : vector<128x32xf32>
    %28 = arith.subf %19, %27 : vector<128x32xf32>
    %29 = arith.mulf %28, %28 : vector<128x32xf32>
    %cst_10 = arith.constant dense<0.000000e+00> : vector<128xf32>
    %30 = vector.multi_reduction <add>, %29, %cst_10 [1] : vector<128x32xf32> to vector<128xf32>
    %31 = vector.shape_cast %30 : vector<128xf32> to vector<128x1xf32>
    %32 = math.sqrt %31 : vector<128x1xf32>
    %c0_11 = arith.constant 0 : index
    %c0_12 = arith.constant 0 : index
    %33 = vector.load %arg4[%c0_11, %c0_12] : memref<128x1xf32, #tpu.memory_space<vmem>>, vector<128x1xf32>
    tpu.vector_store %arg4[%c0_11, %c0_12], %32 {strides = array<i32>} : memref<128x1xf32, #tpu.memory_space<vmem>>, vector<128x1xf32>,
    return
  }
  func.func @transform_0(%arg0: i32) -> (i32, i32) {
    %c0_i32 = arith.constant 0 : i32
    %c0_i32_0 = arith.constant 0 : i32
    return %arg0, %c0_i32 : i32, i32
  }
  func.func @transform_1(%arg0: i32) -> (i32, i32) {
    %c0_i32 = arith.constant 0 : i32
    %c0_i32_0 = arith.constant 0 : i32
    return %arg0, %c0_i32 : i32, i32
  }
  func.func @transform_2(%arg0: i32) -> (i32, i32) {
    %c0_i32 = arith.constant 0 : i32
    %c0_i32_0 = arith.constant 0 : i32
    return %arg0, %c0_i32 : i32, i32
  }
  func.func @transform_3(%arg0: i32) -> (i32, i32) {
    %c0_i32 = arith.constant 0 : i32
    %c0_i32_0 = arith.constant 0 : i32
    return %arg0, %c0_i32 : i32, i32
  }
}

</mosaic_0001>

<llo_original>
// kernel: tpu_custom_call.1
$region0: #{tpu_custom_call.1}
  #allocation0 [shape = 'u32[]', space=smem, size = 0x4, offset = 0x4, fixed_abs, tag = 'smem constant byte address 0x4 - core index']
  #allocation1 [shape = 'u32[144,128]{1,0:T(1,128)}', space=vmem, size = 0x12000, scoped, tag = 'internal scratch']
  %s0 = inlined_call_operand.vmem [shape: f32[128,32], index: 0, kind: input, shape index: {}]
  %s1 = inlined_call_operand.vmem [shape: f32[128,32], index: 1, kind: input, shape index: {}]
  %s2 = inlined_call_operand.vmem [shape: f32[128,32], index: 2, kind: input, shape index: {}]
  %s3 = inlined_call_operand.vmem [shape: f32[128,1], index: 3, kind: output, shape index: {}]
  %s4 = sld [smem:[#allocation0]]
  $region22: #{tpu_custom_call.1} parent=0
    _
  %s6 = ssub.s32 1, %s4
  %s7 = scalar_select 0, %s6, %s4
  // Predicated region
  $region2: #{tpu_custom_call.1} parent=0 // pred_check
    _
  $region3: #{tpu_custom_call.1} parent=0 // pred_check_branch
    %9 = sbr.rel (0) target = $region5
  $region4: #{tpu_custom_call.1} parent=0 // pred_region
    _
  $region5: #{tpu_custom_call.1} parent=0 // pred_fallthru
    _
  // Predicated region
  $region6: #{tpu_custom_call.1} parent=0 // pred_check
    _
  $region7: #{tpu_custom_call.1} parent=0 // pred_check_branch
    %11 = sbr.rel (0) target = $region9
  $region8: #{tpu_custom_call.1} parent=0 // pred_region
    _
  $region9: #{tpu_custom_call.1} parent=0 // pred_fallthru
    _
  // Predicated region
  $region10: #{tpu_custom_call.1} parent=0 // pred_check
    _
  $region11: #{tpu_custom_call.1} parent=0 // pred_check_branch
    %13 = sbr.rel (0) target = $region13
  $region12: #{tpu_custom_call.1} parent=0 // pred_region
    _
  $region13: #{tpu_custom_call.1} parent=0 // pred_fallthru
    _
  %v14 = vld [vmem:[%s0] sm:$0xff]
  %v15 = vld [vmem:[%s0 + $0x8] sm:$0xff]
  %v16 = vld [vmem:[%s0 + $0x10] sm:$0xff]
  %v17 = vld [vmem:[%s0 + $0x18] sm:$0xff]
  %v18 = vld [vmem:[%s0 + $0x20] sm:$0xff]
  %v19 = vld [vmem:[%s0 + $0x28] sm:$0xff]
  %v20 = vld [vmem:[%s0 + $0x30] sm:$0xff]
  %v21 = vld [vmem:[%s0 + $0x38] sm:$0xff]
  %v22 = vld [vmem:[%s0 + $0x40] sm:$0xff]
  %v23 = vld [vmem:[%s0 + $0x48] sm:$0xff]
  %v24 = vld [vmem:[%s0 + $0x50] sm:$0xff]
  %v25 = vld [vmem:[%s0 + $0x58] sm:$0xff]
  %v26 = vld [vmem:[%s0 + $0x60] sm:$0xff]
  %v27 = vld [vmem:[%s0 + $0x68] sm:$0xff]
  %v28 = vld [vmem:[%s0 + $0x70] sm:$0xff]
  %v29 = vld [vmem:[%s0 + $0x78] sm:$0xff]
  %v30 = vld [vmem:[%s1] sm:$0xff]
  %v31 = vld [vmem:[%s1 + $0x8] sm:$0xff]
  %v32 = vld [vmem:[%s1 + $0x10] sm:$0xff]
  %v33 = vld [vmem:[%s1 + $0x18] sm:$0xff]
  %v34 = vld [vmem:[%s1 + $0x20] sm:$0xff]
  %v35 = vld [vmem:[%s1 + $0x28] sm:$0xff]
  %v36 = vld [vmem:[%s1 + $0x30] sm:$0xff]
  %v37 = vld [vmem:[%s1 + $0x38] sm:$0xff]
  %v38 = vld [vmem:[%s1 + $0x40] sm:$0xff]
  %v39 = vld [vmem:[%s1 + $0x48] sm:$0xff]
  %v40 = vld [vmem:[%s1 + $0x50] sm:$0xff]
  %v41 = vld [vmem:[%s1 + $0x58] sm:$0xff]
  %v42 = vld [vmem:[%s1 + $0x60] sm:$0xff]
  %v43 = vld [vmem:[%s1 + $0x68] sm:$0xff]
  %v44 = vld [vmem:[%s1 + $0x70] sm:$0xff]
  %v45 = vld [vmem:[%s1 + $0x78] sm:$0xff]
  %v46 = vld [vmem:[%s2] sm:$0xff]
  %v47 = vld [vmem:[%s2 + $0x8] sm:$0xff]
  %v48 = vld [vmem:[%s2 + $0x10] sm:$0xff]
  %v49 = vld [vmem:[%s2 + $0x18] sm:$0xff]
  %v50 = vld [vmem:[%s2 + $0x20] sm:$0xff]
  %v51 = vld [vmem:[%s2 + $0x28] sm:$0xff]
  %v52 = vld [vmem:[%s2 + $0x30] sm:$0xff]
  %v53 = vld [vmem:[%s2 + $0x38] sm:$0xff]
  %v54 = vld [vmem:[%s2 + $0x40] sm:$0xff]
  %v55 = vld [vmem:[%s2 + $0x48] sm:$0xff]
  %v56 = vld [vmem:[%s2 + $0x50] sm:$0xff]
  %v57 = vld [vmem:[%s2 + $0x58] sm:$0xff]
  %v58 = vld [vmem:[%s2 + $0x60] sm:$0xff]
  %v59 = vld [vmem:[%s2 + $0x68] sm:$0xff]
  %v60 = vld [vmem:[%s2 + $0x70] sm:$0xff]
  %v61 = vld [vmem:[%s2 + $0x78] sm:$0xff]
  %v62 = vmul.f32 %v14, %v14
  %v63 = vmul.f32 %v15, %v15
  %v64 = vmul.f32 %v16, %v16
  %v65 = vmul.f32 %v17, %v17
  %v66 = vmul.f32 %v18, %v18
  %v67 = vmul.f32 %v19, %v19
  %v68 = vmul.f32 %v20, %v20
  %v69 = vmul.f32 %v21, %v21
  %v70 = vmul.f32 %v22, %v22
  %v71 = vmul.f32 %v23, %v23
  %v72 = vmul.f32 %v24, %v24
  %v73 = vmul.f32 %v25, %v25
  %v74 = vmul.f32 %v26, %v26
  %v75 = vmul.f32 %v27, %v27
  %v76 = vmul.f32 %v28, %v28
  %v77 = vmul.f32 %v29, %v29
  %vm78 = vcmask 261120
  %v79 = vsel %vm78, %v62, 0.0
  %80 = vadd.xlane.f32.xlu0 %v79
  %v81 = vpop.xlane.xlu0 %80
  %v82 = vsel %vm78, %v63, 0.0
  %83 = vadd.xlane.f32.xlu0 %v82
  %v84 = vpop.xlane.xlu0 %83
  %v85 = vsel %vm78, %v64, 0.0
  %86 = vadd.xlane.f32.xlu0 %v85
  %v87 = vpop.xlane.xlu0 %86
  %v88 = vsel %vm78, %v65, 0.0
  %89 = vadd.xlane.f32.xlu0 %v88
  %v90 = vpop.xlane.xlu0 %89
  %v91 = vsel %vm78, %v66, 0.0
  %92 = vadd.xlane.f32.xlu0 %v91
  %v93 = vpop.xlane.xlu0 %92
  %v94 = vsel %vm78, %v67, 0.0
  %95 = vadd.xlane.f32.xlu0 %v94
  %v96 = vpop.xlane.xlu0 %95
  %v97 = vsel %vm78, %v68, 0.0
  %98 = vadd.xlane.f32.xlu0 %v97
  %v99 = vpop.xlane.xlu0 %98
  %v100 = vsel %vm78, %v69, 0.0
  %101 = vadd.xlane.f32.xlu0 %v100
  %v102 = vpop.xlane.xlu0 %101
  %v103 = vsel %vm78, %v70, 0.0
  %104 = vadd.xlane.f32.xlu0 %v103
  %v105 = vpop.xlane.xlu0 %104
  %v106 = vsel %vm78, %v71, 0.0
  %107 = vadd.xlane.f32.xlu0 %v106
  %v108 = vpop.xlane.xlu0 %107
  %v109 = vsel %vm78, %v72, 0.0
  %110 = vadd.xlane.f32.xlu0 %v109
  %v111 = vpop.xlane.xlu0 %110
  %v112 = vsel %vm78, %v73, 0.0
  %113 = vadd.xlane.f32.xlu0 %v112
  %v114 = vpop.xlane.xlu0 %113
  %v115 = vsel %vm78, %v74, 0.0
  %116 = vadd.xlane.f32.xlu0 %v115
  %v117 = vpop.xlane.xlu0 %116
  %v118 = vsel %vm78, %v75, 0.0
  %119 = vadd.xlane.f32.xlu0 %v118
  %v120 = vpop.xlane.xlu0 %119
  %v121 = vsel %vm78, %v76, 0.0
  %122 = vadd.xlane.f32.xlu0 %v121
  %v123 = vpop.xlane.xlu0 %122
  %v124 = vsel %vm78, %v77, 0.0
  %125 = vadd.xlane.f32.xlu0 %v124
  %v126 = vpop.xlane.xlu0 %125
  %v127 = vmax.f32 %v81, 1e-24
  %v128 = vmax.f32 %v84, 1e-24
  %v129 = vmax.f32 %v87, 1e-24
  %v130 = vmax.f32 %v90, 1e-24
  %v131 = vmax.f32 %v93, 1e-24
  %v132 = vmax.f32 %v96, 1e-24
  %v133 = vmax.f32 %v99, 1e-24
  %v134 = vmax.f32 %v102, 1e-24
  %v135 = vmax.f32 %v105, 1e-24
  %v136 = vmax.f32 %v108, 1e-24
  %v137 = vmax.f32 %v111, 1e-24
  %v138 = vmax.f32 %v114, 1e-24
  %v139 = vmax.f32 %v117, 1e-24
  %v140 = vmax.f32 %v120, 1e-24
  %v141 = vmax.f32 %v123, 1e-24
  %v142 = vmax.f32 %v126, 1e-24
  %v143 = vrsqrt.pop %v127
  %v144 = vrsqrt.pop %v128
  %v145 = vrsqrt.pop %v129
  %v146 = vrsqrt.pop %v130
  %v147 = vrsqrt.pop %v131
  %v148 = vrsqrt.pop %v132
  %v149 = vrsqrt.pop %v133
  %v150 = vrsqrt.pop %v134
  %v151 = vrsqrt.pop %v135
  %v152 = vrsqrt.pop %v136
  %v153 = vrsqrt.pop %v137
  %v154 = vrsqrt.pop %v138
  %v155 = vrsqrt.pop %v139
  %v156 = vrsqrt.pop %v140
  %v157 = vrsqrt.pop %v141
  %v158 = vrsqrt.pop %v142
  %v159 = vmul.f32 %v14, %v143
  %v160 = vmul.f32 %v15, %v144
  %v161 = vmul.f32 %v16, %v145
  %v162 = vmul.f32 %v17, %v146
  %v163 = vmul.f32 %v18, %v147
  %v164 = vmul.f32 %v19, %v148
  %v165 = vmul.f32 %v20, %v149
  %v166 = vmul.f32 %v21, %v150
  %v167 = vmul.f32 %v22, %v151
  %v168 = vmul.f32 %v23, %v152
  %v169 = vmul.f32 %v24, %v153
  %v170 = vmul.f32 %v25, %v154
  %v171 = vmul.f32 %v26, %v155
  %v172 = vmul.f32 %v27, %v156
  %v173 = vmul.f32 %v28, %v157
  %v174 = vmul.f32 %v29, %v158
  %v175 = vmul.f32 %v30, %v30
  %v176 = vmul.f32 %v31, %v31
  %v177 = vmul.f32 %v32, %v32
  %v178 = vmul.f32 %v33, %v33
  %v179 = vmul.f32 %v34, %v34
  %v180 = vmul.f32 %v35, %v35
  %v181 = vmul.f32 %v36, %v36
  %v182 = vmul.f32 %v37, %v37
  %v183 = vmul.f32 %v38, %v38
  %v184 = vmul.f32 %v39, %v39
  %v185 = vmul.f32 %v40, %v40
  %v186 = vmul.f32 %v41, %v41
  %v187 = vmul.f32 %v42, %v42
  %v188 = vmul.f32 %v43, %v43
  %v189 = vmul.f32 %v44, %v44
  %v190 = vmul.f32 %v45, %v45
  %v191 = vsel %vm78, %v175, 0.0
  %192 = vadd.xlane.f32.xlu0 %v191
  %v193 = vpop.xlane.xlu0 %192
  %v194 = vsel %vm78, %v176, 0.0
  %195 = vadd.xlane.f32.xlu0 %v194
  %v196 = vpop.xlane.xlu0 %195
  %v197 = vsel %vm78, %v177, 0.0
  %198 = vadd.xlane.f32.xlu0 %v197
  %v199 = vpop.xlane.xlu0 %198
  %v200 = vsel %vm78, %v178, 0.0
  %201 = vadd.xlane.f32.xlu0 %v200
  %v202 = vpop.xlane.xlu0 %201
  %v203 = vsel %vm78, %v179, 0.0
  %204 = vadd.xlane.f32.xlu0 %v203
  %v205 = vpop.xlane.xlu0 %204
  %v206 = vsel %vm78, %v180, 0.0
  %207 = vadd.xlane.f32.xlu0 %v206
  %v208 = vpop.xlane.xlu0 %207
  %v209 = vsel %vm78, %v181, 0.0
  %210 = vadd.xlane.f32.xlu0 %v209
  %v211 = vpop.xlane.xlu0 %210
  %v212 = vsel %vm78, %v182, 0.0
  %213 = vadd.xlane.f32.xlu0 %v212
  %v214 = vpop.xlane.xlu0 %213
  %v215 = vsel %vm78, %v183, 0.0
  %216 = vadd.xlane.f32.xlu0 %v215
  %v217 = vpop.xlane.xlu0 %216
  %v218 = vsel %vm78, %v184, 0.0
  %219 = vadd.xlane.f32.xlu0 %v218
  %v220 = vpop.xlane.xlu0 %219
  %v221 = vsel %vm78, %v185, 0.0
  %222 = vadd.xlane.f32.xlu0 %v221
  %v223 = vpop.xlane.xlu0 %222
  %v224 = vsel %vm78, %v186, 0.0
  %225 = vadd.xlane.f32.xlu0 %v224
  %v226 = vpop.xlane.xlu0 %225
  %v227 = vsel %vm78, %v187, 0.0
  %228 = vadd.xlane.f32.xlu0 %v227
  %v229 = vpop.xlane.xlu0 %228
  %v230 = vsel %vm78, %v188, 0.0
  %231 = vadd.xlane.f32.xlu0 %v230
  %v232 = vpop.xlane.xlu0 %231
  %v233 = vsel %vm78, %v189, 0.0
  %234 = vadd.xlane.f32.xlu0 %v233
  %v235 = vpop.xlane.xlu0 %234
  %v236 = vsel %vm78, %v190, 0.0
  %237 = vadd.xlane.f32.xlu0 %v236
  %v238 = vpop.xlane.xlu0 %237
  %v239 = vmax.f32 %v193, 1e-24
  %v240 = vmax.f32 %v196, 1e-24
  %v241 = vmax.f32 %v199, 1e-24
  %v242 = vmax.f32 %v202, 1e-24
  %v243 = vmax.f32 %v205, 1e-24
  %v244 = vmax.f32 %v208, 1e-24
  %v245 = vmax.f32 %v211, 1e-24
  %v246 = vmax.f32 %v214, 1e-24
  %v247 = vmax.f32 %v217, 1e-24
  %v248 = vmax.f32 %v220, 1e-24
  %v249 = vmax.f32 %v223, 1e-24
  %v250 = vmax.f32 %v226, 1e-24
  %v251 = vmax.f32 %v229, 1e-24
  %v252 = vmax.f32 %v232, 1e-24
  %v253 = vmax.f32 %v235, 1e-24
  %v254 = vmax.f32 %v238, 1e-24
  %v255 = vrsqrt.pop %v239
  %v256 = vrsqrt.pop %v240
  %v257 = vrsqrt.pop %v241
  %v258 = vrsqrt.pop %v242
  %v259 = vrsqrt.pop %v243
  %v260 = vrsqrt.pop %v244
  %v261 = vrsqrt.pop %v245
  %v262 = vrsqrt.pop %v246
  %v263 = vrsqrt.pop %v247
  %v264 = vrsqrt.pop %v248
  %v265 = vrsqrt.pop %v249
  %v266 = vrsqrt.pop %v250
  %v267 = vrsqrt.pop %v251
  %v268 = vrsqrt.pop %v252
  %v269 = vrsqrt.pop %v253
  %v270 = vrsqrt.pop %v254
  %v271 = vmul.f32 %v30, %v255
  %v272 = vmul.f32 %v31, %v256
  %v273 = vmul.f32 %v32, %v257
  %v274 = vmul.f32 %v33, %v258
  %v275 = vmul.f32 %v34, %v259
  %v276 = vmul.f32 %v35, %v260
  %v277 = vmul.f32 %v36, %v261
  %v278 = vmul.f32 %v37, %v262
  %v279 = vmul.f32 %v38, %v263
  %v280 = vmul.f32 %v39, %v264
  %v281 = vmul.f32 %v40, %v265
  %v282 = vmul.f32 %v41, %v266
  %v283 = vmul.f32 %v42, %v267
  %v284 = vmul.f32 %v43, %v268
  %v285 = vmul.f32 %v44, %v269
  %v286 = vmul.f32 %v45, %v270
  %v287 = vadd.f32 %v159, %v271
  %v288 = vadd.f32 %v160, %v272
  %v289 = vadd.f32 %v161, %v273
  %v290 = vadd.f32 %v162, %v274
  %v291 = vadd.f32 %v163, %v275
  %v292 = vadd.f32 %v164, %v276
  %v293 = vadd.f32 %v165, %v277
  %v294 = vadd.f32 %v166, %v278
  %v295 = vadd.f32 %v167, %v279
  %v296 = vadd.f32 %v168, %v280
  %v297 = vadd.f32 %v169, %v281
  %v298 = vadd.f32 %v170, %v282
  %v299 = vadd.f32 %v171, %v283
  %v300 = vadd.f32 %v172, %v284
  %v301 = vadd.f32 %v173, %v285
  %v302 = vadd.f32 %v174, %v286
  %v303 = vmul.f32 %v46, %v46
  %v304 = vmul.f32 %v47, %v47
  %v305 = vmul.f32 %v48, %v48
  %v306 = vmul.f32 %v49, %v49
  %v307 = vmul.f32 %v50, %v50
  %v308 = vmul.f32 %v51, %v51
  %v309 = vmul.f32 %v52, %v52
  %v310 = vmul.f32 %v53, %v53
  %v311 = vmul.f32 %v54, %v54
  %v312 = vmul.f32 %v55, %v55
  %v313 = vmul.f32 %v56, %v56
  %v314 = vmul.f32 %v57, %v57
  %v315 = vmul.f32 %v58, %v58
  %v316 = vmul.f32 %v59, %v59
  %v317 = vmul.f32 %v60, %v60
  %v318 = vmul.f32 %v61, %v61
  %v319 = vsel %vm78, %v303, 0.0
  %320 = vadd.xlane.f32.xlu0 %v319
  %v321 = vpop.xlane.xlu0 %320
  %v322 = vsel %vm78, %v304, 0.0
  %323 = vadd.xlane.f32.xlu0 %v322
  %v324 = vpop.xlane.xlu0 %323
  %v325 = vsel %vm78, %v305, 0.0
  %326 = vadd.xlane.f32.xlu0 %v325
  %v327 = vpop.xlane.xlu0 %326
  %v328 = vsel %vm78, %v306, 0.0
  %329 = vadd.xlane.f32.xlu0 %v328
  %v330 = vpop.xlane.xlu0 %329
  %v331 = vsel %vm78, %v307, 0.0
  %332 = vadd.xlane.f32.xlu0 %v331
  %v333 = vpop.xlane.xlu0 %332
  %v334 = vsel %vm78, %v308, 0.0
  %335 = vadd.xlane.f32.xlu0 %v334
  %v336 = vpop.xlane.xlu0 %335
  %v337 = vsel %vm78, %v309, 0.0
  %338 = vadd.xlane.f32.xlu0 %v337
  %v339 = vpop.xlane.xlu0 %338
  %v340 = vsel %vm78, %v310, 0.0
  %341 = vadd.xlane.f32.xlu0 %v340
  %v342 = vpop.xlane.xlu0 %341
  %v343 = vsel %vm78, %v311, 0.0
  %344 = vadd.xlane.f32.xlu0 %v343
  %v345 = vpop.xlane.xlu0 %344
  %v346 = vsel %vm78, %v312, 0.0
  %347 = vadd.xlane.f32.xlu0 %v346
  %v348 = vpop.xlane.xlu0 %347
  %v349 = vsel %vm78, %v313, 0.0
  %350 = vadd.xlane.f32.xlu0 %v349
  %v351 = vpop.xlane.xlu0 %350
  %v352 = vsel %vm78, %v314, 0.0
  %353 = vadd.xlane.f32.xlu0 %v352
  %v354 = vpop.xlane.xlu0 %353
  %v355 = vsel %vm78, %v315, 0.0
  %356 = vadd.xlane.f32.xlu0 %v355
  %v357 = vpop.xlane.xlu0 %356
  %v358 = vsel %vm78, %v316, 0.0
  %359 = vadd.xlane.f32.xlu0 %v358
  %v360 = vpop.xlane.xlu0 %359
  %v361 = vsel %vm78, %v317, 0.0
  %362 = vadd.xlane.f32.xlu0 %v361
  %v363 = vpop.xlane.xlu0 %362
  %v364 = vsel %vm78, %v318, 0.0
  %365 = vadd.xlane.f32.xlu0 %v364
  %v366 = vpop.xlane.xlu0 %365
  %v367 = vmax.f32 %v321, 1e-24
  %v368 = vmax.f32 %v324, 1e-24
  %v369 = vmax.f32 %v327, 1e-24
  %v370 = vmax.f32 %v330, 1e-24
  %v371 = vmax.f32 %v333, 1e-24
  %v372 = vmax.f32 %v336, 1e-24
  %v373 = vmax.f32 %v339, 1e-24
  %v374 = vmax.f32 %v342, 1e-24
  %v375 = vmax.f32 %v345, 1e-24
  %v376 = vmax.f32 %v348, 1e-24
  %v377 = vmax.f32 %v351, 1e-24
  %v378 = vmax.f32 %v354, 1e-24
  %v379 = vmax.f32 %v357, 1e-24
  %v380 = vmax.f32 %v360, 1e-24
  %v381 = vmax.f32 %v363, 1e-24
  %v382 = vmax.f32 %v366, 1e-24
  %v383 = vrsqrt.pop %v367
  %v384 = vrsqrt.pop %v368
  %v385 = vrsqrt.pop %v369
  %v386 = vrsqrt.pop %v370
  %v387 = vrsqrt.pop %v371
  %v388 = vrsqrt.pop %v372
  %v389 = vrsqrt.pop %v373
  %v390 = vrsqrt.pop %v374
  %v391 = vrsqrt.pop %v375
  %v392 = vrsqrt.pop %v376
  %v393 = vrsqrt.pop %v377
  %v394 = vrsqrt.pop %v378
  %v395 = vrsqrt.pop %v379
  %v396 = vrsqrt.pop %v380
  %v397 = vrsqrt.pop %v381
  %v398 = vrsqrt.pop %v382
  %v399 = vmul.f32 %v46, %v383
  %v400 = vmul.f32 %v47, %v384
  %v401 = vmul.f32 %v48, %v385
  %v402 = vmul.f32 %v49, %v386
  %v403 = vmul.f32 %v50, %v387
  %v404 = vmul.f32 %v51, %v388
  %v405 = vmul.f32 %v52, %v389
  %v406 = vmul.f32 %v53, %v390
  %v407 = vmul.f32 %v54, %v391
  %v408 = vmul.f32 %v55, %v392
  %v409 = vmul.f32 %v56, %v393
  %v410 = vmul.f32 %v57, %v394
  %v411 = vmul.f32 %v58, %v395
  %v412 = vmul.f32 %v59, %v396
  %v413 = vmul.f32 %v60, %v397
  %v414 = vmul.f32 %v61, %v398
  %v415 = vsub.f32 %v287, %v399
  %v416 = vsub.f32 %v288, %v400
  %v417 = vsub.f32 %v289, %v401
  %v418 = vsub.f32 %v290, %v402
  %v419 = vsub.f32 %v291, %v403
  %v420 = vsub.f32 %v292, %v404
  %v421 = vsub.f32 %v293, %v405
  %v422 = vsub.f32 %v294, %v406
  %v423 = vsub.f32 %v295, %v407
  %v424 = vsub.f32 %v296, %v408
  %v425 = vsub.f32 %v297, %v409
  %v426 = vsub.f32 %v298, %v410
  %v427 = vsub.f32 %v299, %v411
  %v428 = vsub.f32 %v300, %v412
  %v429 = vsub.f32 %v301, %v413
  %v430 = vsub.f32 %v302, %v414
  %v431 = vmul.f32 %v415, %v415
  %v432 = vmul.f32 %v416, %v416
  %v433 = vmul.f32 %v417, %v417
  %v434 = vmul.f32 %v418, %v418
  %v435 = vmul.f32 %v419, %v419
  %v436 = vmul.f32 %v420, %v420
  %v437 = vmul.f32 %v421, %v421
  %v438 = vmul.f32 %v422, %v422
  %v439 = vmul.f32 %v423, %v423
  %v440 = vmul.f32 %v424, %v424
  %v441 = vmul.f32 %v425, %v425
  %v442 = vmul.f32 %v426, %v426
  %v443 = vmul.f32 %v427, %v427
  %v444 = vmul.f32 %v428, %v428
  %v445 = vmul.f32 %v429, %v429
  %v446 = vmul.f32 %v430, %v430
  %v447 = vsel %vm78, %v431, 0.0
  %448 = vadd.xlane.f32.xlu0 %v447
  %v449 = vpop.xlane.xlu0 %448
  %v450 = vsel %vm78, %v432, 0.0
  %451 = vadd.xlane.f32.xlu0 %v450
  %v452 = vpop.xlane.xlu0 %451
  %v453 = vsel %vm78, %v433, 0.0
  %454 = vadd.xlane.f32.xlu0 %v453
  %v455 = vpop.xlane.xlu0 %454
  %v456 = vsel %vm78, %v434, 0.0
  %457 = vadd.xlane.f32.xlu0 %v456
  %v458 = vpop.xlane.xlu0 %457
  %v459 = vsel %vm78, %v435, 0.0
  %460 = vadd.xlane.f32.xlu0 %v459
  %v461 = vpop.xlane.xlu0 %460
  %v462 = vsel %vm78, %v436, 0.0
  %463 = vadd.xlane.f32.xlu0 %v462
  %v464 = vpop.xlane.xlu0 %463
  %v465 = vsel %vm78, %v437, 0.0
  %466 = vadd.xlane.f32.xlu0 %v465
  %v467 = vpop.xlane.xlu0 %466
  %v468 = vsel %vm78, %v438, 0.0
  %469 = vadd.xlane.f32.xlu0 %v468
  %v470 = vpop.xlane.xlu0 %469
  %v471 = vsel %vm78, %v439, 0.0
  %472 = vadd.xlane.f32.xlu0 %v471
  %v473 = vpop.xlane.xlu0 %472
  %v474 = vsel %vm78, %v440, 0.0
  %475 = vadd.xlane.f32.xlu0 %v474
  %v476 = vpop.xlane.xlu0 %475
  %v477 = vsel %vm78, %v441, 0.0
  %478 = vadd.xlane.f32.xlu0 %v477
  %v479 = vpop.xlane.xlu0 %478
  %v480 = vsel %vm78, %v442, 0.0
  %481 = vadd.xlane.f32.xlu0 %v480
  %v482 = vpop.xlane.xlu0 %481
  %v483 = vsel %vm78, %v443, 0.0
  %484 = vadd.xlane.f32.xlu0 %v483
  %v485 = vpop.xlane.xlu0 %484
  %v486 = vsel %vm78, %v444, 0.0
  %487 = vadd.xlane.f32.xlu0 %v486
  %v488 = vpop.xlane.xlu0 %487
  %v489 = vsel %vm78, %v445, 0.0
  %490 = vadd.xlane.f32.xlu0 %v489
  %v491 = vpop.xlane.xlu0 %490
  %v492 = vsel %vm78, %v446, 0.0
  %493 = vadd.xlane.f32.xlu0 %v492
  %v494 = vpop.xlane.xlu0 %493
  %v495 = vrsqrt.pop %v449
  %v496 = vmul.f32 %v449, %v495
  %vm497 = vcmp.eq.f32.partialorder %v449, inf
  %v498 = vsel %vm497, %v449, %v496
  %vm499 = vcmp.eq.f32.partialorder %v449, 0.0
  %v500 = vand.u32 %v449, 2147483648
  %v501 = vsel %vm499, %v500, %v498
  %v502 = vrsqrt.pop %v452
  %v503 = vmul.f32 %v452, %v502
  %vm504 = vcmp.eq.f32.partialorder %v452, inf
  %v505 = vsel %vm504, %v452, %v503
  %vm506 = vcmp.eq.f32.partialorder %v452, 0.0
  %v507 = vand.u32 %v452, 2147483648
  %v508 = vsel %vm506, %v507, %v505
  %v509 = vrsqrt.pop %v455
  %v510 = vmul.f32 %v455, %v509
  %vm511 = vcmp.eq.f32.partialorder %v455, inf
  %v512 = vsel %vm511, %v455, %v510
  %vm513 = vcmp.eq.f32.partialorder %v455, 0.0
  %v514 = vand.u32 %v455, 2147483648
  %v515 = vsel %vm513, %v514, %v512
  %v516 = vrsqrt.pop %v458
  %v517 = vmul.f32 %v458, %v516
  %vm518 = vcmp.eq.f32.partialorder %v458, inf
  %v519 = vsel %vm518, %v458, %v517
  %vm520 = vcmp.eq.f32.partialorder %v458, 0.0
  %v521 = vand.u32 %v458, 2147483648
  %v522 = vsel %vm520, %v521, %v519
  %v523 = vrsqrt.pop %v461
  %v524 = vmul.f32 %v461, %v523
  %vm525 = vcmp.eq.f32.partialorder %v461, inf
  %v526 = vsel %vm525, %v461, %v524
  %vm527 = vcmp.eq.f32.partialorder %v461, 0.0
  %v528 = vand.u32 %v461, 2147483648
  %v529 = vsel %vm527, %v528, %v526
  %v530 = vrsqrt.pop %v464
  %v531 = vmul.f32 %v464, %v530
  %vm532 = vcmp.eq.f32.partialorder %v464, inf
  %v533 = vsel %vm532, %v464, %v531
  %vm534 = vcmp.eq.f32.partialorder %v464, 0.0
  %v535 = vand.u32 %v464, 2147483648
  %v536 = vsel %vm534, %v535, %v533
  %v537 = vrsqrt.pop %v467
  %v538 = vmul.f32 %v467, %v537
  %vm539 = vcmp.eq.f32.partialorder %v467, inf
  %v540 = vsel %vm539, %v467, %v538
  %vm541 = vcmp.eq.f32.partialorder %v467, 0.0
  %v542 = vand.u32 %v467, 2147483648
  %v543 = vsel %vm541, %v542, %v540
  %v544 = vrsqrt.pop %v470
  %v545 = vmul.f32 %v470, %v544
  %vm546 = vcmp.eq.f32.partialorder %v470, inf
  %v547 = vsel %vm546, %v470, %v545
  %vm548 = vcmp.eq.f32.partialorder %v470, 0.0
  %v549 = vand.u32 %v470, 2147483648
  %v550 = vsel %vm548, %v549, %v547
  %v551 = vrsqrt.pop %v473
  %v552 = vmul.f32 %v473, %v551
  %vm553 = vcmp.eq.f32.partialorder %v473, inf
  %v554 = vsel %vm553, %v473, %v552
  %vm555 = vcmp.eq.f32.partialorder %v473, 0.0
  %v556 = vand.u32 %v473, 2147483648
  %v557 = vsel %vm555, %v556, %v554
  %v558 = vrsqrt.pop %v476
  %v559 = vmul.f32 %v476, %v558
  %vm560 = vcmp.eq.f32.partialorder %v476, inf
  %v561 = vsel %vm560, %v476, %v559
  %vm562 = vcmp.eq.f32.partialorder %v476, 0.0
  %v563 = vand.u32 %v476, 2147483648
  %v564 = vsel %vm562, %v563, %v561
  %v565 = vrsqrt.pop %v479
  %v566 = vmul.f32 %v479, %v565
  %vm567 = vcmp.eq.f32.partialorder %v479, inf
  %v568 = vsel %vm567, %v479, %v566
  %vm569 = vcmp.eq.f32.partialorder %v479, 0.0
  %v570 = vand.u32 %v479, 2147483648
  %v571 = vsel %vm569, %v570, %v568
  %v572 = vrsqrt.pop %v482
  %v573 = vmul.f32 %v482, %v572
  %vm574 = vcmp.eq.f32.partialorder %v482, inf
  %v575 = vsel %vm574, %v482, %v573
  %vm576 = vcmp.eq.f32.partialorder %v482, 0.0
  %v577 = vand.u32 %v482, 2147483648
  %v578 = vsel %vm576, %v577, %v575
  %v579 = vrsqrt.pop %v485
  %v580 = vmul.f32 %v485, %v579
  %vm581 = vcmp.eq.f32.partialorder %v485, inf
  %v582 = vsel %vm581, %v485, %v580
  %vm583 = vcmp.eq.f32.partialorder %v485, 0.0
  %v584 = vand.u32 %v485, 2147483648
  %v585 = vsel %vm583, %v584, %v582
  %v586 = vrsqrt.pop %v488
  %v587 = vmul.f32 %v488, %v586
  %vm588 = vcmp.eq.f32.partialorder %v488, inf
  %v589 = vsel %vm588, %v488, %v587
  %vm590 = vcmp.eq.f32.partialorder %v488, 0.0
  %v591 = vand.u32 %v488, 2147483648
  %v592 = vsel %vm590, %v591, %v589
  %v593 = vrsqrt.pop %v491
  %v594 = vmul.f32 %v491, %v593
  %vm595 = vcmp.eq.f32.partialorder %v491, inf
  %v596 = vsel %vm595, %v491, %v594
  %vm597 = vcmp.eq.f32.partialorder %v491, 0.0
  %v598 = vand.u32 %v491, 2147483648
  %v599 = vsel %vm597, %v598, %v596
  %v600 = vrsqrt.pop %v494
  %v601 = vmul.f32 %v494, %v600
  %vm602 = vcmp.eq.f32.partialorder %v494, inf
  %v603 = vsel %vm602, %v494, %v601
  %vm604 = vcmp.eq.f32.partialorder %v494, 0.0
  %v605 = vand.u32 %v494, 2147483648
  %v606 = vsel %vm604, %v605, %v603
  %vm607 = vcmask 7168
  %608 = vst.msk [vmem:[%s3] sm:$0xff] %vm607, %v501
  %609 = vst.msk [vmem:[%s3 + $0x8] sm:$0xff] %vm607, %v508
  %610 = vst.msk [vmem:[%s3 + $0x10] sm:$0xff] %vm607, %v515
  %611 = vst.msk [vmem:[%s3 + $0x18] sm:$0xff] %vm607, %v522
  %612 = vst.msk [vmem:[%s3 + $0x20] sm:$0xff] %vm607, %v529
  %613 = vst.msk [vmem:[%s3 + $0x28] sm:$0xff] %vm607, %v536
  %614 = vst.msk [vmem:[%s3 + $0x30] sm:$0xff] %vm607, %v543
  %615 = vst.msk [vmem:[%s3 + $0x38] sm:$0xff] %vm607, %v550
  %616 = vst.msk [vmem:[%s3 + $0x40] sm:$0xff] %vm607, %v557
  %617 = vst.msk [vmem:[%s3 + $0x48] sm:$0xff] %vm607, %v564
  %618 = vst.msk [vmem:[%s3 + $0x50] sm:$0xff] %vm607, %v571
  %619 = vst.msk [vmem:[%s3 + $0x58] sm:$0xff] %vm607, %v578
  %620 = vst.msk [vmem:[%s3 + $0x60] sm:$0xff] %vm607, %v585
  %621 = vst.msk [vmem:[%s3 + $0x68] sm:$0xff] %vm607, %v592
  %622 = vst.msk [vmem:[%s3 + $0x70] sm:$0xff] %vm607, %v599
  %623 = vst.msk [vmem:[%s3 + $0x78] sm:$0xff] %vm607, %v606
  // Predicated region
  $region14: #{tpu_custom_call.1} parent=0 // pred_check
    _
  $region15: #{tpu_custom_call.1} parent=0 // pred_check_branch
    %625 = sbr.rel (0) target = $region17
  $region16: #{tpu_custom_call.1} parent=0 // pred_region
    _
  $region17: #{tpu_custom_call.1} parent=0 // pred_fallthru
    _
  // Predicated region
  $region18: #{tpu_custom_call.1} parent=0 // pred_check
    _
  $region19: #{tpu_custom_call.1} parent=0 // pred_check_branch
    %627 = sbr.rel (0) target = $region21
  $region20: #{tpu_custom_call.1} parent=0 // pred_region
    _
  $region21: #{tpu_custom_call.1} parent=0 // pred_fallthru
    _

</llo_original>
